<compile_context>
chip_gen: v7x
topology: tpu7x:2x2x1
jax: 0.10.0
libtpu: 0.0.40
codegen_flags: <defaults>
</compile_context>

<pallas_src>
import jax
import jax.numpy as jnp
from jax import lax
from jax.experimental import pallas as pl
from jax.experimental.pallas import tpu as pltpu


def _round_up(n, m):
    return ((n + m - 1) // m) * m


def gating_kernel(x_ref, w_ref, b_ref, o_ref):
    """One batch tile, computed transposed.

    x_ref: [TB, D] bf16   (batch tile)
    w_ref: [E,  D] bf16   (nn.Linear weight layout, resident)
    b_ref: [E,  1] f32    (bias, resident)
    o_ref: [E, TB] f32    (experts on sublanes, batch on lanes -> lane-dense)
    """
    # MXU: W @ x^T with f32 accumulation -> [E, TB] logits; bias broadcasts
    # across lanes.
    logits = lax.dot_general(
        w_ref[...], x_ref[...],
        dimension_numbers=(((1,), (1,)), ((), ())),
        preferred_element_type=jnp.float32,
    ) + b_ref[...]

    # Numerically stable softmax over the expert (sublane) axis, all in f32.
    m = jnp.max(logits, axis=0, keepdims=True)
    e = jnp.exp(logits - m)
    denom = jnp.sum(e, axis=0, keepdims=True)
    o_ref[...] = (e * pl.reciprocal(denom, approx=True)).astype(o_ref.dtype)


def gating_network(x, w, b, *, block_b=512):
    """softmax(x @ w.T + b, axis=-1) on TPU via Pallas.

    x: [B, D] float, w: [E, D] (PyTorch nn.Linear weight layout), b: [E].
    Returns [B, E] float32 probabilities.
    """
    B, D = x.shape
    E = w.shape[0]

    # Batch tile must be a multiple of 128 so the transposed output block is
    # lane-dense; pad B up to a whole number of tiles (padded rows are zeros
    # and are sliced away below).
    tb = min(block_b, _round_up(B, 128))
    b_pad = _round_up(B, tb)
    if b_pad != B:
        x = jnp.pad(x, ((0, b_pad - B), (0, 0)))

    # Stream the big operand (x) and W as bf16; accumulate in f32 on the MXU.
    xb = x.astype(jnp.bfloat16)
    wb = w.astype(jnp.bfloat16)
    b2 = b.reshape(E, 1).astype(jnp.float32)

    out_t = pl.pallas_call(
        gating_kernel,
        out_shape=jax.ShapeDtypeStruct((E, b_pad), jnp.float32),
        grid=(b_pad // tb,),
        in_specs=[
            pl.BlockSpec((tb, D), lambda i: (i, 0)),   # x marches over batch
            pl.BlockSpec((E, D), lambda i: (0, 0)),    # W resident
            pl.BlockSpec((E, 1), lambda i: (0, 0)),    # bias resident
        ],
        out_specs=pl.BlockSpec((E, tb), lambda i: (0, i)),
        compiler_params=pltpu.CompilerParams(
            dimension_semantics=("parallel",),         # megacore on v7x
        ),
    )(xb, wb, b2)

    # Layout plumbing back to [B, E] (tiny E x B slab).
    return out_t.T[:B]


if __name__ == "__main__":
    # Small shapes consistent with the module: batch=8, input_dim=32, experts=8
    B, D, E = 8, 32, 8

    key = jax.random.PRNGKey(0)
    kx, kw, kb = jax.random.split(key, 3)

    x = jax.random.normal(kx, (B, D), dtype=jnp.float32)
    # nn.Linear-style init; weight kept in PyTorch layout [E, D].
    bound = 1.0 / jnp.sqrt(jnp.float32(D))
    w = jax.random.uniform(kw, (E, D), minval=-bound, maxval=bound,
                           dtype=jnp.float32)
    b = jax.random.uniform(kb, (E,), minval=-bound, maxval=bound,
                           dtype=jnp.float32)

    out = gating_network(x, w, b)
    out = jax.block_until_ready(out)

    # Reference on the same bf16-cast operands (kernel streams x/W as bf16);
    # tolerance loosened for the approx (EUP) reciprocal in the softmax.
    xb = x.astype(jnp.bfloat16).astype(jnp.float32)
    wb = w.astype(jnp.bfloat16).astype(jnp.float32)
    ref = jax.nn.softmax(xb @ wb.T + b, axis=-1)

    assert out.shape == (B, E)
    assert jnp.allclose(out, ref, atol=3e-3, rtol=3e-3)
    assert jnp.allclose(jnp.sum(out, axis=-1), 1.0, atol=3e-3)

    print("KERNEL_OK")
</pallas_src>

<mosaic_0001>
module attributes {stable_mosaic.version = 11 : i64} {
  func.func @gating_kernel(%arg0: i32, %arg1: memref<128x32xbf16, #tpu.memory_space<vmem>>, %arg2: memref<8x32xbf16, #tpu.memory_space<vmem>>, %arg3: memref<8x1xf32, #tpu.memory_space<vmem>>, %arg4: memref<8x128xf32, #tpu.memory_space<vmem>>) attributes {dimension_semantics = [#tpu.dimension_semantics<parallel>], iteration_bounds = array<i64: 1>, scalar_prefetch = 0 : i64, scratch_operands = 0 : i64, tpu.core_type = #tpu.core_type<tc>, window_params = [{transform_indices = @transform_0, window_bounds = array<i64: 128, 32>}, {pipeline_mode = #tpu.pipeline_mode<synchronous>, transform_indices = @transform_1, window_bounds = array<i64: 8, 32>}, {pipeline_mode = #tpu.pipeline_mode<synchronous>, transform_indices = @transform_2, window_bounds = array<i64: 8, 1>}, {transform_indices = @transform_3, window_bounds = array<i64: 8, 128>}]} {
    %c0 = arith.constant 0 : index
    %c0_0 = arith.constant 0 : index
    %0 = vector.load %arg2[%c0, %c0_0] : memref<8x32xbf16, #tpu.memory_space<vmem>>, vector<8x32xbf16>
    %c0_1 = arith.constant 0 : index
    %c0_2 = arith.constant 0 : index
    %1 = vector.load %arg1[%c0_1, %c0_2] : memref<128x32xbf16, #tpu.memory_space<vmem>>, vector<128x32xbf16>
    %cst = arith.constant dense<0.000000e+00> : vector<8x128xf32>
    %2 = tpu.matmul %0, %1, %cst {dimension_numbers = #tpu.dot_dimension_numbers<[1], [1], [0], [0], [0, 0, 1, 0], [], []>} : vector<8x32xbf16>, vector<128x32xbf16>, vector<8x128xf32> -> vector<8x128xf32>
    %c0_3 = arith.constant 0 : index
    %c0_4 = arith.constant 0 : index
    %3 = vector.load %arg3[%c0_3, %c0_4] : memref<8x1xf32, #tpu.memory_space<vmem>>, vector<8x1xf32>
    %4 = vector.broadcast %3 : vector<8x1xf32> to vector<8x128xf32>
    %5 = arith.addf %2, %4 : vector<8x128xf32>
    %cst_5 = arith.constant dense<0xFF800000> : vector<128xf32>
    %6 = vector.multi_reduction <maximumf>, %5, %cst_5 [0] : vector<8x128xf32> to vector<128xf32>
    %7 = vector.shape_cast %6 : vector<128xf32> to vector<1x128xf32>
    %8 = vector.broadcast %7 : vector<1x128xf32> to vector<8x128xf32>
    %9 = arith.subf %5, %8 : vector<8x128xf32>
    %10 = math.exp %9 : vector<8x128xf32>
    %cst_6 = arith.constant dense<0.000000e+00> : vector<128xf32>
    %11 = vector.multi_reduction <add>, %10, %cst_6 [0] : vector<8x128xf32> to vector<128xf32>
    %12 = vector.shape_cast %11 : vector<128xf32> to vector<1x128xf32>
    %13 = tpu.reciprocal %12 {approx = true} : vector<1x128xf32> -> vector<1x128xf32>
    %14 = vector.broadcast %13 : vector<1x128xf32> to vector<8x128xf32>
    %15 = arith.mulf %10, %14 : vector<8x128xf32>
    %c0_7 = arith.constant 0 : index
    %c0_8 = arith.constant 0 : index
    %16 = vector.load %arg4[%c0_7, %c0_8] : memref<8x128xf32, #tpu.memory_space<vmem>>, vector<8x128xf32>
    tpu.vector_store %arg4[%c0_7, %c0_8], %15 {strides = array<i32>} : memref<8x128xf32, #tpu.memory_space<vmem>>, vector<8x128xf32>,
    return
  }
  func.func @transform_0(%arg0: i32) -> (i32, i32) {
    %c0_i32 = arith.constant 0 : i32
    %c0_i32_0 = arith.constant 0 : i32
    return %arg0, %c0_i32 : i32, i32
  }
  func.func @transform_1(%arg0: i32) -> (i32, i32) {
    %c0_i32 = arith.constant 0 : i32
    %c0_i32_0 = arith.constant 0 : i32
    %c0_i32_1 = arith.constant 0 : i32
    return %c0_i32, %c0_i32_0 : i32, i32
  }
  func.func @transform_2(%arg0: i32) -> (i32, i32) {
    %c0_i32 = arith.constant 0 : i32
    %c0_i32_0 = arith.constant 0 : i32
    %c0_i32_1 = arith.constant 0 : i32
    return %c0_i32, %c0_i32_0 : i32, i32
  }
  func.func @transform_3(%arg0: i32) -> (i32, i32) {
    %c0_i32 = arith.constant 0 : i32
    %c0_i32_0 = arith.constant 0 : i32
    return %c0_i32, %arg0 : i32, i32
  }
}

</mosaic_0001>

<llo_original>
// kernel: tpu_custom_call.1
$region0: #{tpu_custom_call.1}
  #allocation0 [shape = 'u32[]', space=smem, size = 0x4, offset = 0x4, fixed_abs, tag = 'smem constant byte address 0x4 - core index']
  #allocation1 [shape = 'u32[144,128]{1,0:T(1,128)}', space=vmem, size = 0x12000, scoped, tag = 'internal scratch']
  %s0 = inlined_call_operand.vmem [shape: bf16[128,32], index: 0, kind: input, shape index: {}]
  %s1 = inlined_call_operand.vmem [shape: bf16[8,32], index: 1, kind: input, shape index: {}]
  %s2 = inlined_call_operand.vmem [shape: f32[8,1], index: 2, kind: input, shape index: {}]
  %s3 = inlined_call_operand.hbm [shape: f32[8,128], index: 3, kind: output, shape index: {}]
  %s4 = sld [smem:[#allocation0]]
  $region22: #{tpu_custom_call.1} parent=0
    _
  %s6 = ssub.s32 1, %s4
  %s7 = scalar_select 0, %s6, %s4
  $region1: #{tpu_custom_call.1} parent=0
    #allocation2 [shape = 'u8[4096]{0}', space=vmem, size = 0x1000, scoped, tag = 'output window, operand 0, single buffered']
    #allocation3 [shape = 's32[1]{0}', space=sflag, size = 0x4, scoped, tag = 'scoped memory for tpu_custom_call.1']
    %8 = vsyncpa [#allocation3], 0
    // Predicated region
    $region2: #{tpu_custom_call.1} parent=1 // pred_check
      _
    $region3: #{tpu_custom_call.1} parent=1 // pred_check_branch
      %10 = sbr.rel (0) target = $region5
    $region4: #{tpu_custom_call.1} parent=1 // pred_region
      _
    $region5: #{tpu_custom_call.1} parent=1 // pred_fallthru
      _
    // Predicated region
    $region6: #{tpu_custom_call.1} parent=1 // pred_check
      _
    $region7: #{tpu_custom_call.1} parent=1 // pred_check_branch
      %12 = sbr.rel (0) target = $region9
    $region8: #{tpu_custom_call.1} parent=1 // pred_region
      _
    $region9: #{tpu_custom_call.1} parent=1 // pred_fallthru
      _
    // Predicated region
    $region10: #{tpu_custom_call.1} parent=1 // pred_check
      _
    $region11: #{tpu_custom_call.1} parent=1 // pred_check_branch
      %14 = sbr.rel (0) target = $region13
    $region12: #{tpu_custom_call.1} parent=1 // pred_region
      _
    $region13: #{tpu_custom_call.1} parent=1 // pred_fallthru
      _
    %v16 = vld [vmem:[%s1] sm:$0xf]
    %v17 = vld [vmem:[%s0] sm:$0xf]
    %v18 = vld [vmem:[%s0 + $0x4] sm:$0xf]
    %v19 = vld [vmem:[%s0 + $0x8] sm:$0xf]
    %v20 = vld [vmem:[%s0 + $0xc] sm:$0xf]
    %v21 = vld [vmem:[%s0 + $0x10] sm:$0xf]
    %v22 = vld [vmem:[%s0 + $0x14] sm:$0xf]
    %v23 = vld [vmem:[%s0 + $0x18] sm:$0xf]
    %v24 = vld [vmem:[%s0 + $0x1c] sm:$0xf]
    %v25 = vld [vmem:[%s0 + $0x20] sm:$0xf]
    %v26 = vld [vmem:[%s0 + $0x24] sm:$0xf]
    %v27 = vld [vmem:[%s0 + $0x28] sm:$0xf]
    %v28 = vld [vmem:[%s0 + $0x2c] sm:$0xf]
    %v29 = vld [vmem:[%s0 + $0x30] sm:$0xf]
    %v30 = vld [vmem:[%s0 + $0x34] sm:$0xf]
    %v31 = vld [vmem:[%s0 + $0x38] sm:$0xf]
    %v32 = vld [vmem:[%s0 + $0x3c] sm:$0xf]
    %v33 = vld [vmem:[%s2] sm:$0xff]
    %35 = vset.pattern.permute.xlu0 0
    %36 = vperm.xlu0 %35, %v33
    %v37 = vpop.permute.xlu0 %36
    %v55 = vunpack.c.l.b16 %v17
    %v56 = vunpack.c.l.b16 %v18
    %v57 = vunpack.c.l.b16 %v19
    %v58 = vunpack.c.l.b16 %v20
    %v59 = vunpack.c.l.b16 %v21
    %v60 = vunpack.c.l.b16 %v22
    %v61 = vunpack.c.l.b16 %v23
    %v62 = vunpack.c.l.b16 %v24
    %v63 = vunpack.c.l.b16 %v25
    %v64 = vunpack.c.l.b16 %v26
    %v65 = vunpack.c.l.b16 %v27
    %v66 = vunpack.c.l.b16 %v28
    %v67 = vunpack.c.l.b16 %v29
    %v68 = vunpack.c.l.b16 %v30
    %v69 = vunpack.c.l.b16 %v31
    %v70 = vunpack.c.l.b16 %v32
    %v71 = vpack.c.b16 %v56, %v55
    %v72 = vpack.c.b16 %v58, %v57
    %v73 = vpack.c.b16 %v60, %v59
    %v74 = vpack.c.b16 %v62, %v61
    %v75 = vpack.c.b16 %v64, %v63
    %v76 = vpack.c.b16 %v66, %v65
    %v77 = vpack.c.b16 %v68, %v67
    %v78 = vpack.c.b16 %v70, %v69
    %vm79 = vcmask 261120
    %v81 = vsel %vm79, %v16, 0
    %v84 = vsel %vm79, %v71, 0
    %v87 = vsel %vm79, %v72, 0
    %v90 = vsel %vm79, %v73, 0
    %v93 = vsel %vm79, %v74, 0
    %v96 = vsel %vm79, %v75, 0
    %v99 = vsel %vm79, %v76, 0
    %v102 = vsel %vm79, %v77, 0
    %v105 = vsel %vm79, %v78, 0
    %107 = vmatprep.subr.bf16.mxu0 0
    %108 = vmatpush1.bf16.xpose.msra.mxu0 %v84
    %109 = vmatprep.subr.bf16.mxu0 0
    %110 = vmatpush1.bf16.xpose.msra.mxu0 %v87
    %111 = vmatprep.subr.bf16.mxu0 0
    %112 = vmatpush1.bf16.xpose.msra.mxu0 %v90
    %113 = vmatprep.subr.bf16.mxu0 0
    %114 = vmatpush1.bf16.xpose.msra.mxu0 %v93
    %115 = vmatprep.subr.bf16.mxu0 0
    %116 = vmatpush1.bf16.xpose.msra.mxu0 %v96
    %117 = vmatprep.subr.bf16.mxu0 0
    %118 = vmatpush1.bf16.xpose.msra.mxu0 %v99
    %119 = vmatprep.subr.bf16.mxu0 0
    %120 = vmatpush1.bf16.xpose.msra.mxu0 %v102
    %121 = vmatprep.subr.bf16.mxu0 0
    %122 = vmatpush1.bf16.xpose.msra.mxu0 %v105
    %123 = vmatprep.subr.bf16.mxu0 0
    %124 = vmatpush1.bf16.xpose.msra.mxu0 0
    %125 = vmatprep.subr.bf16.mxu0 0
    %126 = vmatpush1.bf16.xpose.msra.mxu0 0
    %127 = vmatprep.subr.bf16.mxu0 0
    %128 = vmatpush1.bf16.xpose.msra.mxu0 0
    %129 = vmatprep.subr.bf16.mxu0 0
    %130 = vmatpush1.bf16.xpose.msra.mxu0 0
    %131 = vmatprep.subr.bf16.mxu0 0
    %132 = vmatpush1.bf16.xpose.msra.mxu0 0
    %133 = vmatprep.subr.bf16.mxu0 0
    %134 = vmatpush1.bf16.xpose.msra.mxu0 0
    %135 = vmatprep.subr.bf16.mxu0 0
    %136 = vmatpush1.bf16.xpose.msra.mxu0 0
    %137 = vmatprep.subr.bf16.mxu0 0
    %138 = vmatpush1.bf16.xpose.msra.mxu0 0
    %139 = vmatprep.mubr.bf16.mxu0 0
    %140 = vmatmul.mubr.bf16.gmra.mrb[0].mxu0 %v81
    %v141 = vpop.f32.mrb[0].mxu0
    %v142 = vadd.f32 %v37, %v141
    %v143 = vpop.f32.mrb[0].mxu0
    %v144 = vpop.f32.mrb[0].mxu0
    %v145 = vpop.f32.mrb[0].mxu0
    %146 = vdwg.mxu0
    %v147 = vrot.slane %v142, 4
    %v148 = vmax.f32 %v142, %v147
    %v149 = vrot.slane %v148, 2
    %v150 = vmax.f32 %v148, %v149
    %v151 = vrot.slane %v150, 1
    %v152 = vmax.f32 %v150, %v151
    %v153 = vsub.f32 %v142, %v152
    %v154 = vmul.f32 %v153, 1.442695
    %v155 = vpow.pop %v154
    %v156 = vrot.slane %v155, 4
    %v157 = vadd.f32 %v155, %v156
    %v158 = vrot.slane %v157, 2
    %v159 = vadd.f32 %v157, %v158
    %v160 = vrot.slane %v159, 1
    %v161 = vadd.f32 %v159, %v160
    %v162 = vrcp.pop %v161
    %v163 = vmul.f32 %v155, %v162
    %164 = vst [vmem:[#allocation2] sm:$0xff] %v163
    // Predicated region
    $region14: #{tpu_custom_call.1} parent=1 // pred_check
      _
    $region15: #{tpu_custom_call.1} parent=1 // pred_check_branch
      %166 = sbr.rel (0) target = $region17
    $region16: #{tpu_custom_call.1} parent=1 // pred_region
      %s168 = ssub.s32 128, 128
      %169 = vsyncadd [#allocation3], %s168
      %s171 = sshll.u32 [#allocation2], 4
      %s172 = int_to_ptr.vmem [resolvable:$true] %s171
      %174 = dma.vmem_to_hbm [thread:$0]  %s172, 128, %s3, [#allocation3]
    $region17: #{tpu_custom_call.1} parent=1 // pred_fallthru
      _
    // Predicated region
    $region18: #{tpu_custom_call.1} parent=1 // pred_check
      _
    $region19: #{tpu_custom_call.1} parent=1 // pred_check_branch
      %176 = sbr.rel (0) target = $region21
    $region20: #{tpu_custom_call.1} parent=1 // pred_region
      %177 = dma.done [#allocation3], 128
    $region21: #{tpu_custom_call.1} parent=1 // pred_fallthru
      _
    %178 = vsyncpa [#allocation3], 1

</llo_original>
